<compile_context>
chip_gen: v7x
topology: tpu7x:2x2x1
jax: 0.10.0
libtpu: 0.0.40
codegen_flags: <defaults>
</compile_context>

<pallas_src>
import functools
import math

import jax
import jax.numpy as jnp
from jax.experimental import pallas as pl
from jax.experimental.pallas import tpu as pltpu


def _round_up(v, m):
    return (v + m - 1) // m * m


# ---------------------------------------------------------------------------
# Stage 1: supp = X @ W  (tiny; hoisted out of the main reduction loop)
# ---------------------------------------------------------------------------
def _supp_kernel(x_ref, w_ref, supp_ref):
    supp_ref[...] = jnp.dot(
        x_ref[...], w_ref[...], preferred_element_type=jnp.float32
    ).astype(supp_ref.dtype)


# ---------------------------------------------------------------------------
# Stage 2: out = A @ supp + bias  (A-streaming matmul, reduction axis last)
# ---------------------------------------------------------------------------
def _main_kernel(supp_ref, adj_ref, b_ref, out_ref, *, n, tk, mask_cols):
    k = pl.program_id(1)

    @pl.when(k == 0)
    def _():
        # Output block is VMEM-resident across k (constant index_map), so it
        # doubles as the f32 accumulator; seed it with the bias.
        out_ref[...] = jnp.broadcast_to(b_ref[...], out_ref.shape)

    a = adj_ref[...]
    if mask_cols:
        # Last reduction tile is ragged: zero its tail columns so Pallas'
        # unspecified boundary padding never enters the MXU.  (supp's matching
        # tail rows are real zeros from the explicit pad in the wrapper.)
        valid = n - k * tk                       # == tk for all but the last tile
        col = jax.lax.broadcasted_iota(jnp.int32, a.shape, 1)
        a = jnp.where(col < valid, a, jnp.zeros_like(a))

    out_ref[...] += jnp.dot(a, supp_ref[...], preferred_element_type=jnp.float32)


def dg_graph_conv(x, adjacency, weight, bias, *,
                  tile_m=1024, tile_k=1024,
                  compute_dtype=jnp.bfloat16):
    """Pallas forward of DGGraphConv: adjacency @ (x @ weight) + bias.

    x:         [N, in_size]   float32
    adjacency: [N, N]         dense; ideally already in `compute_dtype`
    weight:    [in_size, out_size]
    bias:      [1, out_size]
    returns:   [N, out_size]  float32
    """
    n, in_size = x.shape
    out_size = weight.shape[1]

    # Adjacency is streamed as-is.  Produce it in `compute_dtype` upstream to
    # avoid this N^2 cast (for large graphs it otherwise dominates wall-clock).
    if adjacency.dtype != compute_dtype:
        adjacency = adjacency.astype(compute_dtype)

    # ---- tile geometry ------------------------------------------------------
    out_p = _round_up(out_size, 128)                 # lane-dense feature width

    tm = n if n <= 16 else min(tile_m, (n // 16) * 16)     # bf16 sublane packing
    tk = n if n <= 128 else min(tile_k, (n // 128) * 128)  # lane-aligned K tile

    grid_m = pl.cdiv(n, tm)
    # v7x megacore: prefer an even number of row tiles on the "parallel" axis.
    if grid_m > 1 and grid_m % 2 == 1:
        tm_even = _round_up(pl.cdiv(n, grid_m + 1), 16)
        if 16 <= tm_even <= tm:
            tm = tm_even
            grid_m = pl.cdiv(n, tm)
    grid_k = pl.cdiv(n, tk)
    n_k = grid_k * tk                                # supp rows (zero-padded)
    mask_cols = (n % tk) != 0

    adj_itemsize = jnp.dtype(adjacency.dtype).itemsize
    supp_itemsize = jnp.dtype(compute_dtype).itemsize

    # ---- stage 1: supp = X @ W  (f32 matmul, single cast to compute dtype) ---
    x_p = x if n_k == n else jnp.pad(x, ((0, n_k - n), (0, 0)))
    w_p = weight if out_p == out_size else jnp.pad(weight, ((0, 0), (0, out_p - out_size)))
    b_p = bias.astype(jnp.float32)
    if out_p != out_size:
        b_p = jnp.pad(b_p, ((0, 0), (0, out_p - out_size)))

    supp = pl.pallas_call(
        _supp_kernel,
        out_shape=jax.ShapeDtypeStruct((n_k, out_p), compute_dtype),
        grid_spec=pltpu.PrefetchScalarGridSpec(
            num_scalar_prefetch=0,
            grid=(grid_k,),
            in_specs=[
                pl.BlockSpec((tk, in_size), lambda i: (i, 0)),
                pl.BlockSpec((in_size, out_p), lambda i: (0, 0)),
            ],
            out_specs=pl.BlockSpec((tk, out_p), lambda i: (i, 0)),
        ),
        compiler_params=pltpu.CompilerParams(dimension_semantics=("parallel",)),
        cost_estimate=pl.CostEstimate(
            flops=2 * n_k * in_size * out_p,
            transcendentals=0,
            bytes_accessed=(x_p.size * x_p.dtype.itemsize
                            + w_p.size * w_p.dtype.itemsize
                            + n_k * out_p * supp_itemsize),
        ),
    )(x_p, w_p)

    # ---- stage 2: out = A @ supp + bias  (adjacency streaming) ---------------
    main_cost = pl.CostEstimate(
        flops=2 * n * n_k * out_p,
        transcendentals=0,
        bytes_accessed=(n * n * adj_itemsize                     # A read once
                        + grid_m * n_k * out_p * supp_itemsize   # supp re-streamed per row tile
                        + b_p.size * 4
                        + n * out_p * 4),                        # f32 output
    )

    # VMEM budget: triple-buffered A tile + double-buffered supp/out + bias.
    vmem_bytes = (3 * tm * tk * adj_itemsize
                  + 2 * tk * out_p * supp_itemsize
                  + 2 * tm * out_p * 4
                  + 2 * out_p * 4)
    vmem_limit_bytes = min(48 * 1024 * 1024, max(16 * 1024 * 1024, 2 * vmem_bytes))

    kernel = functools.partial(_main_kernel, n=n, tk=tk, mask_cols=mask_cols)

    def _call_main(adj_spec):
        return pl.pallas_call(
            kernel,
            out_shape=jax.ShapeDtypeStruct((n, out_p), jnp.float32),
            grid_spec=pltpu.PrefetchScalarGridSpec(
                num_scalar_prefetch=0,
                grid=(grid_m, grid_k),
                in_specs=[
                    pl.BlockSpec((tk, out_p), lambda i, k: (k, 0)),   # supp
                    adj_spec,                                          # A
                    pl.BlockSpec((1, out_p), lambda i, k: (0, 0)),     # bias
                ],
                out_specs=pl.BlockSpec((tm, out_p), lambda i, k: (i, 0)),
            ),
            compiler_params=pltpu.CompilerParams(
                dimension_semantics=("parallel", "arbitrary"),
                vmem_limit_bytes=vmem_limit_bytes,
            ),
            cost_estimate=main_cost,
        )(supp, adjacency, b_p)

    try:
        # Deeper buffering on the dominant (adjacency) DMA stream.
        out = _call_main(pl.BlockSpec((tm, tk), lambda i, k: (i, k),
                                      pipeline_mode=pl.Buffered(3)))
    except Exception:
        # Fallback: default double-buffering if this JAX/Mosaic build rejects
        # pipeline_mode=pl.Buffered on this spec.
        out = _call_main(pl.BlockSpec((tm, tk), lambda i, k: (i, k)))

    return out if out_p == out_size else out[:, :out_size]


# ---------------------------------------------------------------------------
# Parameter init matching DGGraphConv.reset_parameters(), plus demo inputs.
# ---------------------------------------------------------------------------
def init_params(key, in_size, out_size):
    stdv = 1.0 / math.sqrt(out_size)
    kw, kb = jax.random.split(key)
    weight = jax.random.uniform(kw, (in_size, out_size), dtype=jnp.float32,
                                minval=-stdv, maxval=stdv)
    bias = jax.random.uniform(kb, (1, out_size), dtype=jnp.float32,
                              minval=-stdv, maxval=stdv)
    return weight, bias


def _make_inputs(key, n, in_size, out_size):
    k_x, k_adj, k_p = jax.random.split(key, 3)
    x = jax.random.normal(k_x, (n, in_size), dtype=jnp.float32)
    adj_raw = jax.random.uniform(k_adj, (n, n), dtype=jnp.float32)
    adjacency = adj_raw / jnp.sum(adj_raw, axis=1, keepdims=True)
    weight, bias = init_params(k_p, in_size, out_size)
    return x, adjacency, weight, bias


def _ref_forward(x, adjacency, weight, bias):
    supp = jnp.dot(x, weight, precision=jax.lax.Precision.HIGHEST)
    return jnp.dot(adjacency, supp, precision=jax.lax.Precision.HIGHEST) + bias


if __name__ == "__main__":
    key = jax.random.PRNGKey(0)
    k0, k1 = jax.random.split(key)

    # --- small graph, full-precision path (tight check): N=8, in=16, out=32 --
    N, IN_SIZE, OUT_SIZE = 8, 16, 32
    x, adj, w, b = _make_inputs(k0, N, IN_SIZE, OUT_SIZE)
    out = jax.block_until_ready(
        dg_graph_conv(x, adj, w, b, compute_dtype=jnp.float32))
    ref = _ref_forward(x, adj, w, b)
    assert out.shape == (N, OUT_SIZE)
    assert jnp.allclose(out, ref, atol=1e-5, rtol=1e-5)

    # --- larger ragged graph (N=300), bf16 streaming path --------------------
    # Adjacency is cast to bf16 where it is produced (no N^2 pad/cast inside
    # the wrapper); the same bf16 values feed the f32 reference.
    N2 = 300
    x2, adj2, w2, b2 = _make_inputs(k1, N2, IN_SIZE, OUT_SIZE)
    adj2_bf16 = adj2.astype(jnp.bfloat16)
    out2 = jax.block_until_ready(
        dg_graph_conv(x2, adj2_bf16, w2, b2, compute_dtype=jnp.bfloat16))
    ref2 = _ref_forward(x2, adj2_bf16.astype(jnp.float32), w2, b2)
    assert out2.shape == (N2, OUT_SIZE)
    assert jnp.allclose(out2, ref2, atol=5e-2, rtol=5e-2)

    # --- same graph, small tiles: exercises multi-tile grid, ragged-tail mask,
    #     even row-tile nudge, and the f32 path through the tiled reduction ---
    out3 = jax.block_until_ready(
        dg_graph_conv(x2, adj2, w2, b2, tile_m=128, tile_k=128,
                      compute_dtype=jnp.float32))
    ref3 = _ref_forward(x2, adj2, w2, b2)
    assert jnp.allclose(out3, ref3, atol=1e-4, rtol=1e-4)

    print("KERNEL_OK")
</pallas_src>

<mosaic_0001>
module attributes {stable_mosaic.version = 11 : i64} {
  func.func @_supp_kernel(%arg0: i32, %arg1: memref<8x16xf32, #tpu.memory_space<vmem>>, %arg2: memref<16x128xf32, #tpu.memory_space<vmem>>, %arg3: memref<8x128xf32, #tpu.memory_space<vmem>>) attributes {dimension_semantics = [#tpu.dimension_semantics<parallel>], iteration_bounds = array<i64: 1>, scalar_prefetch = 0 : i64, scratch_operands = 0 : i64, tpu.core_type = #tpu.core_type<tc>, window_params = [{transform_indices = @transform_0, window_bounds = array<i64: 8, 16>}, {pipeline_mode = #tpu.pipeline_mode<synchronous>, transform_indices = @transform_1, window_bounds = array<i64: 16, 128>}, {transform_indices = @transform_2, window_bounds = array<i64: 8, 128>}]} {
    %c0 = arith.constant 0 : index
    %c0_0 = arith.constant 0 : index
    %0 = vector.load %arg1[%c0, %c0_0] : memref<8x16xf32, #tpu.memory_space<vmem>>, vector<8x16xf32>
    %c0_1 = arith.constant 0 : index
    %c0_2 = arith.constant 0 : index
    %1 = vector.load %arg2[%c0_1, %c0_2] : memref<16x128xf32, #tpu.memory_space<vmem>>, vector<16x128xf32>
    %cst = arith.constant dense<0.000000e+00> : vector<8x128xf32>
    %2 = tpu.matmul %0, %1, %cst {dimension_numbers = #tpu.dot_dimension_numbers<[1], [0], [0], [1], [0, 0, 1, 1], [], []>} : vector<8x16xf32>, vector<16x128xf32>, vector<8x128xf32> -> vector<8x128xf32>
    %c0_3 = arith.constant 0 : index
    %c0_4 = arith.constant 0 : index
    %3 = vector.load %arg3[%c0_3, %c0_4] : memref<8x128xf32, #tpu.memory_space<vmem>>, vector<8x128xf32>
    tpu.vector_store %arg3[%c0_3, %c0_4], %2 {strides = array<i32>} : memref<8x128xf32, #tpu.memory_space<vmem>>, vector<8x128xf32>,
    return
  }
  func.func @transform_0(%arg0: i32) -> (i32, i32) {
    %c0_i32 = arith.constant 0 : i32
    %c0_i32_0 = arith.constant 0 : i32
    return %arg0, %c0_i32 : i32, i32
  }
  func.func @transform_1(%arg0: i32) -> (i32, i32) {
    %c0_i32 = arith.constant 0 : i32
    %c0_i32_0 = arith.constant 0 : i32
    %c0_i32_1 = arith.constant 0 : i32
    return %c0_i32, %c0_i32_0 : i32, i32
  }
  func.func @transform_2(%arg0: i32) -> (i32, i32) {
    %c0_i32 = arith.constant 0 : i32
    %c0_i32_0 = arith.constant 0 : i32
    return %arg0, %c0_i32 : i32, i32
  }
}

</mosaic_0001>

<llo_original>
// kernel: tpu_custom_call.1
$region0: #{tpu_custom_call.1}
  #allocation0 [shape = 'u32[]', space=smem, size = 0x4, offset = 0x4, fixed_abs, tag = 'smem constant byte address 0x4 - core index']
  #allocation1 [shape = 'u32[144,128]{1,0:T(1,128)}', space=vmem, size = 0x12000, scoped, tag = 'internal scratch']
  %s0 = inlined_call_operand.hbm [shape: f32[8,16], index: 0, kind: input, shape index: {}]
  %s1 = inlined_call_operand.hbm [shape: f32[16,128], index: 1, kind: input, shape index: {}]
  %s2 = inlined_call_operand.hbm [shape: f32[8,128], index: 2, kind: output, shape index: {}]
  %s3 = sld [smem:[#allocation0]]
  $region26: #{tpu_custom_call.1} parent=0
    _
  %s5 = ssub.s32 1, %s3
  %s6 = scalar_select 0, %s5, %s3
  $region1: #{tpu_custom_call.1} parent=0
    #allocation2 [shape = 'u8[4096]{0}', space=vmem, size = 0x1000, scoped, tag = 'input window, operand 0, single buffered']
    #allocation3 [shape = 's32[1]{0}', space=sflag, size = 0x4, scoped, tag = 'scoped memory for tpu_custom_call.1']
    #allocation4 [shape = 's32[1]{0}', space=sflag, size = 0x4, scoped, tag = 'scoped memory for tpu_custom_call.1']
    #allocation5 [shape = 'u8[8192]{0}', space=vmem, size = 0x2000, scoped, tag = 'input window, operand 1, single buffered']
    #allocation6 [shape = 's32[1]{0}', space=sflag, size = 0x4, scoped, tag = 'scoped memory for tpu_custom_call.1']
    #allocation7 [shape = 'u8[4096]{0}', space=vmem, size = 0x1000, scoped, tag = 'output window, operand 0, single buffered']
    %7 = vsyncpa [#allocation3], 0
    %8 = vsyncpa [#allocation6], 0
    %9 = vsyncpa [#allocation4], 0
    // Predicated region
    $region2: #{tpu_custom_call.1} parent=1 // pred_check
      _
    $region3: #{tpu_custom_call.1} parent=1 // pred_check_branch
      %11 = sbr.rel (0) target = $region5
    $region4: #{tpu_custom_call.1} parent=1 // pred_region
      %s13 = ssub.s32 128, 128
      %14 = vsyncadd [#allocation3], %s13
      %s16 = sshll.u32 [#allocation2], 4
      %s17 = int_to_ptr.vmem [resolvable:$true] %s16
      %19 = dma.hbm_to_vmem [thread:$0]  %s0, 128, %s17, [#allocation3]
    $region5: #{tpu_custom_call.1} parent=1 // pred_fallthru
      _
    // Predicated region
    $region6: #{tpu_custom_call.1} parent=1 // pred_check
      _
    $region7: #{tpu_custom_call.1} parent=1 // pred_check_branch
      %21 = sbr.rel (0) target = $region9
    $region8: #{tpu_custom_call.1} parent=1 // pred_region
      %s23 = ssub.s32 256, 256
      %24 = vsyncadd [#allocation6], %s23
      %s25 = sshll.u32 [#allocation5], 4
      %s26 = int_to_ptr.vmem [resolvable:$true] %s25
      %31 = dma.hbm_to_vmem [thread:$0]  %s1, 256, %s26, [#allocation6], 128, 128, 8
    $region9: #{tpu_custom_call.1} parent=1 // pred_fallthru
      _
    // Predicated region
    $region10: #{tpu_custom_call.1} parent=1 // pred_check
      _
    $region11: #{tpu_custom_call.1} parent=1 // pred_check_branch
      %33 = sbr.rel (0) target = $region13
    $region12: #{tpu_custom_call.1} parent=1 // pred_region
      %34 = dma.done [#allocation3], 128
    $region13: #{tpu_custom_call.1} parent=1 // pred_fallthru
      _
    // Predicated region
    $region14: #{tpu_custom_call.1} parent=1 // pred_check
      _
    $region15: #{tpu_custom_call.1} parent=1 // pred_check_branch
      %36 = sbr.rel (0) target = $region17
    $region16: #{tpu_custom_call.1} parent=1 // pred_region
      %37 = dma.done [#allocation6], 256
    $region17: #{tpu_custom_call.1} parent=1 // pred_fallthru
      _
    %v38 = vld [vmem:[#allocation2] sm:$0xff]
    %v39 = vld [vmem:[#allocation5] sm:$0xff]
    %v40 = vld [vmem:[#allocation5 + $0x8] sm:$0xff]
    %vm41 = vcmask 130048
    %v43 = vsel %vm41, %v38, 0
    %45 = vmatprep.subr.mxu0 0.0
    %46 = vmatpush1.msra.mxu0 %v39
    %47 = vmatprep.subr.mxu0 0.0
    %48 = vmatpush1.msra.mxu0 %v40
    %49 = vmatprep.subr.mxu0 0.0
    %50 = vmatpush1.msra.mxu0 0.0
    %51 = vmatprep.subr.mxu0 0.0
    %52 = vmatpush1.msra.mxu0 0.0
    %53 = vmatprep.subr.mxu0 0.0
    %54 = vmatpush1.msra.mxu0 0.0
    %55 = vmatprep.subr.mxu0 0.0
    %56 = vmatpush1.msra.mxu0 0.0
    %57 = vmatprep.subr.mxu0 0.0
    %58 = vmatpush1.msra.mxu0 0.0
    %59 = vmatprep.subr.mxu0 0.0
    %60 = vmatpush1.msra.mxu0 0.0
    %61 = vmatprep.subr.mxu0 0.0
    %62 = vmatpush1.msra.mxu0 0.0
    %63 = vmatprep.subr.mxu0 0.0
    %64 = vmatpush1.msra.mxu0 0.0
    %65 = vmatprep.subr.mxu0 0.0
    %66 = vmatpush1.msra.mxu0 0.0
    %67 = vmatprep.subr.mxu0 0.0
    %68 = vmatpush1.msra.mxu0 0.0
    %69 = vmatprep.subr.mxu0 0.0
    %70 = vmatpush1.msra.mxu0 0.0
    %71 = vmatprep.subr.mxu0 0.0
    %72 = vmatpush1.msra.mxu0 0.0
    %73 = vmatprep.subr.mxu0 0.0
    %74 = vmatpush1.msra.mxu0 0.0
    %75 = vmatprep.subr.mxu0 0.0
    %76 = vmatpush1.msra.mxu0 0.0
    %77 = vmatprep.subr.mxu0 0.0
    %78 = vmatpush1.msra.mxu0 0.0
    %79 = vmatprep.subr.mxu0 0.0
    %80 = vmatpush1.msra.mxu0 0.0
    %81 = vmatprep.subr.mxu0 0.0
    %82 = vmatpush1.msra.mxu0 0.0
    %83 = vmatprep.subr.mxu0 0.0
    %84 = vmatpush1.msra.mxu0 0.0
    %85 = vmatprep.subr.mxu0 0.0
    %86 = vmatpush1.msra.mxu0 0.0
    %87 = vmatprep.subr.mxu0 0.0
    %88 = vmatpush1.msra.mxu0 0.0
    %89 = vmatprep.subr.mxu0 0.0
    %90 = vmatpush1.msra.mxu0 0.0
    %91 = vmatprep.subr.mxu0 0.0
    %92 = vmatpush1.msra.mxu0 0.0
    %93 = vmatprep.subr.mxu0 0.0
    %94 = vmatpush1.msra.mxu0 0.0
    %95 = vmatprep.subr.mxu0 0.0
    %96 = vmatpush1.msra.mxu0 0.0
    %97 = vmatprep.subr.mxu0 0.0
    %98 = vmatpush1.msra.mxu0 0.0
    %99 = vmatprep.subr.mxu0 0.0
    %100 = vmatpush1.msra.mxu0 0.0
    %101 = vmatprep.subr.mxu0 0.0
    %102 = vmatpush1.msra.mxu0 0.0
    %103 = vmatprep.subr.mxu0 0.0
    %104 = vmatpush1.msra.mxu0 0.0
    %105 = vmatprep.subr.mxu0 0.0
    %106 = vmatpush1.msra.mxu0 0.0
    %107 = vmatprep.subr.mxu0 0.0
    %108 = vmatpush1.msra.mxu0 0.0
    %109 = vmatprep.mubr.f32.mxu0 0.0
    %110 = vmatmul.mubr.f32.gmra.mrb[0].mxu0 %v43
    %v111 = vpop.f32.mrb[0].mxu0
    %v112 = vadd.f32 0.0, %v111
    %v113 = vpop.f32.mrb[0].mxu0
    %114 = vdwg.mxu0
    %115 = vst [vmem:[#allocation7] sm:$0xff] %v112
    // Predicated region
    $region18: #{tpu_custom_call.1} parent=1 // pred_check
      _
    $region19: #{tpu_custom_call.1} parent=1 // pred_check_branch
      %117 = sbr.rel (0) target = $region21
    $region20: #{tpu_custom_call.1} parent=1 // pred_region
      %s119 = ssub.s32 128, 128
      %120 = vsyncadd [#allocation4], %s119
      %s122 = sshll.u32 [#allocation7], 4
      %s123 = int_to_ptr.vmem [resolvable:$true] %s122
      %125 = dma.vmem_to_hbm [thread:$0]  %s123, 128, %s2, [#allocation4]
    $region21: #{tpu_custom_call.1} parent=1 // pred_fallthru
      _
    // Predicated region
    $region22: #{tpu_custom_call.1} parent=1 // pred_check
      _
    $region23: #{tpu_custom_call.1} parent=1 // pred_check_branch
      %127 = sbr.rel (0) target = $region25
    $region24: #{tpu_custom_call.1} parent=1 // pred_region
      %128 = dma.done [#allocation4], 128
    $region25: #{tpu_custom_call.1} parent=1 // pred_fallthru
      _
    %129 = vsyncpa [#allocation3], 1
    %130 = vsyncpa [#allocation6], 1
    %131 = vsyncpa [#allocation4], 1

</llo_original>
